<compile_context>
chip_gen: v7x
topology: tpu7x:2x2x1
jax: 0.10.0
libtpu: 0.0.40
codegen_flags: <defaults>
</compile_context>

<pallas_src>
import functools
import math

import jax
import jax.numpy as jnp
from jax.experimental import pallas as pl
from jax.experimental.pallas import tpu as pltpu


def _conv_ln_relu_kernel(x_ref, w_ref, g_ref, b_ref, m_ref, o_ref,
                         *, cout, ksize, pad, t, lb, eps):
    # x_ref: (Cin, Lb)      input slab, batch folded into lanes (Lb % T == 0)
    # w_ref: (K*Cout, Cin)  conv weight; row k*Cout + co holds weight[co, :, k]
    # g_ref: (Cout, 1)      LayerNorm gamma
    # b_ref: (Cout, 1)      LayerNorm beta
    # m_ref: (1, Lb)        mask (bf16 0/1), cast to f32 in VMEM
    # o_ref: (Cout, Lb)     output slab (lane-dense store)
    x = x_ref[...].astype(jnp.float32)
    w = w_ref[...].astype(jnp.float32)

    # All K taps' channel mixes in one MXU matmul: (K*Cout, Lb).
    z = jnp.dot(w, x, preferred_element_type=jnp.float32,
                precision=jax.lax.Precision.HIGHEST)

    # Position of each lane inside its folded batch row.  Blocks start at
    # multiples of T (Lb % T == 0), so a block-local iota is sufficient.
    r = jax.lax.broadcasted_iota(jnp.int32, (1, lb), 1) % t

    # Combine taps with lane shifts; the validity mask implements 'same'
    # zero padding and keeps shifts from leaking across batch rows.
    acc = None
    for k in range(ksize):
        delta = k - pad                               # temporal offset of tap k
        zk = z[k * cout:(k + 1) * cout, :]            # (Cout, Lb), sublane aligned
        if delta != 0:
            zk = pltpu.roll(zk, shift=(-delta) % lb, axis=1)
            valid = jnp.logical_and(r >= -delta, r < t - delta)
            zk = jnp.where(valid, zk, 0.0)
        acc = zk if acc is None else acc + zk

    # Mask before the norm (matches: x = x * mask.unsqueeze(1).float()).
    m = m_ref[...].astype(jnp.float32)                # (1, Lb)
    y = acc * m                                       # (Cout, Lb)

    # LayerNorm over the channel (sublane) dim, eps=1e-6, var = E[y^2] - mu^2.
    inv_c = 1.0 / cout
    mu = jnp.sum(y, axis=0, keepdims=True) * inv_c        # (1, Lb)
    ms = jnp.sum(y * y, axis=0, keepdims=True) * inv_c    # (1, Lb)
    var = jnp.maximum(ms - mu * mu, 0.0)
    yn = (y - mu) * jax.lax.rsqrt(var + eps)
    yn = yn * g_ref[...] + b_ref[...]                 # affine over channels

    # ReLU, then mask again.
    o_ref[...] = (jnp.maximum(yn, 0.0) * m).astype(o_ref.dtype)


def _choose_lane_block(total_lanes, t, cin, cout, *,
                       min_steps=8, target_bytes=1 << 20):
    """Per-grid-step lane width: a multiple of both T (whole batch rows per
    block -> no conv halo) and 128 (lane-dense loads/stores).  Grown toward a
    per-step VMEM byte target, but capped so the grid keeps >= min_steps
    steps (pipelining + megacore sharding) whenever the data is big enough."""
    base = t * 128 // math.gcd(t, 128)                # lcm(T, 128)
    per_lane = (cin + cout + 1) * 4                   # x + out + mask bytes/lane
    by_bytes = max(1, target_bytes // (per_lane * base))
    by_steps = max(1, (total_lanes - 1) // (max(min_steps - 1, 1) * base))
    mult = max(1, min(by_bytes, by_steps))
    while mult > 1 and total_lanes % (base * mult) != 0:
        mult -= 1                                     # prefer an exact tiling
    lb = base * mult
    return lb, pl.cdiv(total_lanes, lb) * lb


def conv_module_forward(x, mask, weight, gamma, beta):
    """x: (B, Cin, T) (PyTorch NCL); mask: (B, T) bool/float.

    Returns (y, mask) with y: (B, Cout, T), matching ConvModule.forward for
    the stride=1 'same' configuration.
    """
    B, Cin, T = x.shape
    Cout, _, K = weight.shape
    pad = (K - 1) // 2        # 'same' padding for stride=1
    # TODO(synk): the stride>1 branch (nearest-interpolation of the mask when
    # the conv output length != mask length) is not implemented.
    assert mask.shape == (B, T)

    L = B * T
    lb, l_pad = _choose_lane_block(L, T, Cin, Cout)
    grid = l_pad // lb

    # Layout plumbing (cheap XLA copies): fold batch into the lane dim so
    # every kernel load/store is lane-dense.
    x_t = jnp.transpose(x, (1, 0, 2)).reshape(Cin, L)
    m_t = mask.astype(jnp.bfloat16).reshape(1, L)
    if l_pad != L:
        x_t = jnp.pad(x_t, ((0, 0), (0, l_pad - L)))
        m_t = jnp.pad(m_t, ((0, 0), (0, l_pad - L)))

    # Weight as (K*Cout, Cin): row k*Cout + co holds weight[co, :, k].
    w2 = jnp.transpose(weight, (2, 0, 1)).reshape(K * Cout, Cin)
    w2 = w2.astype(jnp.float32)
    g2 = gamma.reshape(Cout, 1).astype(jnp.float32)
    b2 = beta.reshape(Cout, 1).astype(jnp.float32)

    kernel = functools.partial(
        _conv_ln_relu_kernel,
        cout=Cout, ksize=K, pad=pad, t=T, lb=lb, eps=1e-6)

    y = pl.pallas_call(
        kernel,
        out_shape=jax.ShapeDtypeStruct((Cout, l_pad), jnp.float32),
        grid=(grid,),
        in_specs=[
            pl.BlockSpec((Cin, lb), lambda i: (0, i)),          # x slab
            pl.BlockSpec((K * Cout, Cin), lambda i: (0, 0)),    # conv weight
            pl.BlockSpec((Cout, 1), lambda i: (0, 0)),          # LN gamma
            pl.BlockSpec((Cout, 1), lambda i: (0, 0)),          # LN beta
            pl.BlockSpec((1, lb), lambda i: (0, i)),            # mask
        ],
        out_specs=pl.BlockSpec((Cout, lb), lambda i: (0, i)),
        compiler_params=pltpu.CompilerParams(
            dimension_semantics=("parallel",),
            vmem_limit_bytes=32 * 1024 * 1024),
    )(x_t, w2, g2, b2, m_t)

    # Back to the PyTorch NCL layout.
    y = jnp.transpose(y[:, :L].reshape(Cout, B, T), (1, 0, 2))
    return y, mask


def _reference_forward(x, mask, weight, gamma, beta):
    """Pure-JAX reference mirroring the PyTorch forward."""
    K = weight.shape[-1]
    pad = (K - 1) // 2
    y = jax.lax.conv_general_dilated(
        x, weight, window_strides=(1,), padding=[(pad, pad)],
        dimension_numbers=("NCH", "OIH", "NCH"),
        precision=jax.lax.Precision.HIGHEST)
    m = mask.astype(jnp.float32)[:, None, :]
    y = y * m
    yt = jnp.transpose(y, (0, 2, 1))
    mu = yt.mean(-1, keepdims=True)
    var = ((yt - mu) ** 2).mean(-1, keepdims=True)
    yn = (yt - mu) / jnp.sqrt(var + 1e-6) * gamma + beta
    y = jnp.transpose(yn, (0, 2, 1))
    y = jnp.maximum(y, 0.0)
    return y * m


if __name__ == "__main__":
    B, Cin, Cout, T, K = 16, 4, 8, 32, 3

    key = jax.random.PRNGKey(0)
    k_x, k_w, k_m, k_g, k_b = jax.random.split(key, 5)

    # Conv1d weight: kaiming_uniform_(a=sqrt(5)) -> U(-1/sqrt(fan_in), 1/sqrt(fan_in)).
    fan_in = Cin * K
    bound = 1.0 / math.sqrt(fan_in)
    weight = jax.random.uniform(k_w, (Cout, Cin, K), jnp.float32, -bound, bound)
    # LN affine init is weight=1 / bias=0; perturb slightly (as if trained) so
    # the affine path is actually exercised by the check.
    gamma = 1.0 + 0.05 * jax.random.normal(k_g, (Cout,), jnp.float32)
    beta = 0.05 * jax.random.normal(k_b, (Cout,), jnp.float32)

    x = jax.random.normal(k_x, (B, Cin, T), jnp.float32)
    mask = jax.random.uniform(k_m, (B, T)) > 0.3     # bool, same length as conv out

    fwd = jax.jit(conv_module_forward)
    y, mask_out = fwd(x, mask, weight, gamma, beta)
    y = jax.block_until_ready(y)

    y_ref = _reference_forward(x, mask, weight, gamma, beta)
    assert y.shape == (B, Cout, T)
    assert mask_out.shape == mask.shape and mask_out.dtype == mask.dtype
    err = float(jnp.max(jnp.abs(y - y_ref)))
    assert jnp.allclose(y, y_ref, rtol=1e-5, atol=1e-5), f"mismatch vs reference: {err}"
    print("KERNEL_OK")
</pallas_src>

<mosaic_0001>
module attributes {stable_mosaic.version = 11 : i64} {
  func.func @_conv_ln_relu_kernel(%arg0: i32, %arg1: memref<4x128xf32, #tpu.memory_space<vmem>>, %arg2: memref<24x4xf32, #tpu.memory_space<vmem>>, %arg3: memref<8x1xf32, #tpu.memory_space<vmem>>, %arg4: memref<8x1xf32, #tpu.memory_space<vmem>>, %arg5: memref<1x128xbf16, #tpu.memory_space<vmem>>, %arg6: memref<8x128xf32, #tpu.memory_space<vmem>>) attributes {dimension_semantics = [#tpu.dimension_semantics<parallel>], iteration_bounds = array<i64: 4>, scalar_prefetch = 0 : i64, scratch_operands = 0 : i64, tpu.core_type = #tpu.core_type<tc>, window_params = [{transform_indices = @transform_0, window_bounds = array<i64: 4, 128>}, {pipeline_mode = #tpu.pipeline_mode<synchronous>, transform_indices = @transform_1, window_bounds = array<i64: 24, 4>}, {pipeline_mode = #tpu.pipeline_mode<synchronous>, transform_indices = @transform_2, window_bounds = array<i64: 8, 1>}, {pipeline_mode = #tpu.pipeline_mode<synchronous>, transform_indices = @transform_3, window_bounds = array<i64: 8, 1>}, {transform_indices = @transform_4, window_bounds = array<i64: 1, 128>}, {transform_indices = @transform_5, window_bounds = array<i64: 8, 128>}]} {
    %c0 = arith.constant 0 : index
    %c0_0 = arith.constant 0 : index
    %0 = vector.load %arg1[%c0, %c0_0] : memref<4x128xf32, #tpu.memory_space<vmem>>, vector<4x128xf32>
    %c0_1 = arith.constant 0 : index
    %c0_2 = arith.constant 0 : index
    %1 = vector.load %arg2[%c0_1, %c0_2] : memref<24x4xf32, #tpu.memory_space<vmem>>, vector<24x4xf32>
    %cst = arith.constant dense<0.000000e+00> : vector<24x128xf32>
    %2 = tpu.matmul %1, %0, %cst {dimension_numbers = #tpu.dot_dimension_numbers<[1], [0], [0], [1], [0, 0, 1, 1], [], []>, precision = #tpu.contract_precision<fp32>} : vector<24x4xf32>, vector<4x128xf32>, vector<24x128xf32> -> vector<24x128xf32>
    %3 = tpu.iota {dimensions = array<i32: 1>} : vector<1x128xi32>
    %c32_i32 = arith.constant 32 : i32
    %c0_i32 = arith.constant 0 : i32
    %4 = arith.cmpi eq, %c32_i32, %c0_i32 : i32
    %c1_i32 = arith.constant 1 : i32
    %5 = arith.select %4, %c1_i32, %c32_i32 : i32
    %6 = vector.broadcast %5 : i32 to vector<1x128xi32>
    %7 = arith.remsi %3, %6 : vector<1x128xi32>
    %c0_i32_3 = arith.constant 0 : i32
    %8 = vector.broadcast %c0_i32_3 : i32 to vector<1x128xi32>
    %9 = arith.cmpi ne, %7, %8 : vector<1x128xi32>
    %c0_i32_4 = arith.constant 0 : i32
    %10 = vector.broadcast %c0_i32_4 : i32 to vector<1x128xi32>
    %11 = arith.cmpi slt, %7, %10 : vector<1x128xi32>
    %c0_i32_5 = arith.constant 0 : i32
    %12 = arith.cmpi slt, %5, %c0_i32_5 : i32
    %13 = vector.broadcast %12 : i1 to vector<1x128xi1>
    %14 = vector.broadcast %13 : vector<1x128xi1> to vector<1x128xi1>
    %15 = arith.xori %11, %14 : vector<1x128xi1>
    %16 = arith.andi %15, %9 : vector<1x128xi1>
    %17 = vector.broadcast %5 : i32 to vector<1x128xi32>
    %18 = arith.addi %7, %17 : vector<1x128xi32>
    %19 = arith.select %16, %18, %7 : vector<1x128xi1>, vector<1x128xi32>
    %20 = vector.extract_strided_slice %2 {offsets = [0, 0], sizes = [8, 128], strides = [1, 1]} : vector<24x128xf32> to vector<8x128xf32>
    %c1_i32_6 = arith.constant 1 : i32
    %21 = tpu.dynamic_rotate %20 by %c1_i32_6 dim 1 : vector<8x128xf32>, i32 -> vector<8x128xf32>
    %c1_i32_7 = arith.constant 1 : i32
    %22 = vector.broadcast %c1_i32_7 : i32 to vector<1x128xi32>
    %23 = arith.cmpi sge, %19, %22 : vector<1x128xi32>
    %c33_i32 = arith.constant 33 : i32
    %24 = vector.broadcast %c33_i32 : i32 to vector<1x128xi32>
    %25 = arith.cmpi slt, %19, %24 : vector<1x128xi32>
    %26 = arith.andi %23, %25 : vector<1x128xi1>
    %cst_8 = arith.constant 0.000000e+00 : f32
    %27 = vector.shape_cast %26 : vector<1x128xi1> to vector<1x128xi1>
    %28 = vector.broadcast %27 : vector<1x128xi1> to vector<8x128xi1>
    %29 = vector.broadcast %cst_8 : f32 to vector<8x128xf32>
    %30 = arith.select %28, %21, %29 : vector<8x128xi1>, vector<8x128xf32>
    %31 = vector.extract_strided_slice %2 {offsets = [8, 0], sizes = [8, 128], strides = [1, 1]} : vector<24x128xf32> to vector<8x128xf32>
    %32 = arith.addf %30, %31 : vector<8x128xf32>
    %33 = vector.extract_strided_slice %2 {offsets = [16, 0], sizes = [8, 128], strides = [1, 1]} : vector<24x128xf32> to vector<8x128xf32>
    %c127_i32 = arith.constant 127 : i32
    %34 = tpu.dynamic_rotate %33 by %c127_i32 dim 1 : vector<8x128xf32>, i32 -> vector<8x128xf32>
    %c-1_i32 = arith.constant -1 : i32
    %35 = vector.broadcast %c-1_i32 : i32 to vector<1x128xi32>
    %36 = arith.cmpi sge, %19, %35 : vector<1x128xi32>
    %c31_i32 = arith.constant 31 : i32
    %37 = vector.broadcast %c31_i32 : i32 to vector<1x128xi32>
    %38 = arith.cmpi slt, %19, %37 : vector<1x128xi32>
    %39 = arith.andi %36, %38 : vector<1x128xi1>
    %cst_9 = arith.constant 0.000000e+00 : f32
    %40 = vector.shape_cast %39 : vector<1x128xi1> to vector<1x128xi1>
    %41 = vector.broadcast %40 : vector<1x128xi1> to vector<8x128xi1>
    %42 = vector.broadcast %cst_9 : f32 to vector<8x128xf32>
    %43 = arith.select %41, %34, %42 : vector<8x128xi1>, vector<8x128xf32>
    %44 = arith.addf %32, %43 : vector<8x128xf32>
    %c0_10 = arith.constant 0 : index
    %c0_11 = arith.constant 0 : index
    %45 = vector.load %arg5[%c0_10, %c0_11] : memref<1x128xbf16, #tpu.memory_space<vmem>>, vector<1x128xbf16>
    %46 = arith.extf %45 : vector<1x128xbf16> to vector<1x128xf32>
    %47 = vector.broadcast %46 : vector<1x128xf32> to vector<8x128xf32>
    %48 = arith.mulf %44, %47 : vector<8x128xf32>
    %cst_12 = arith.constant dense<0.000000e+00> : vector<128xf32>
    %49 = vector.multi_reduction <add>, %48, %cst_12 [0] : vector<8x128xf32> to vector<128xf32>
    %50 = vector.shape_cast %49 : vector<128xf32> to vector<1x128xf32>
    %cst_13 = arith.constant 1.250000e-01 : f32
    %51 = vector.broadcast %cst_13 : f32 to vector<1x128xf32>
    %52 = arith.mulf %50, %51 : vector<1x128xf32>
    %53 = arith.mulf %48, %48 : vector<8x128xf32>
    %cst_14 = arith.constant dense<0.000000e+00> : vector<128xf32>
    %54 = vector.multi_reduction <add>, %53, %cst_14 [0] : vector<8x128xf32> to vector<128xf32>
    %55 = vector.shape_cast %54 : vector<128xf32> to vector<1x128xf32>
    %cst_15 = arith.constant 1.250000e-01 : f32
    %56 = vector.broadcast %cst_15 : f32 to vector<1x128xf32>
    %57 = arith.mulf %55, %56 : vector<1x128xf32>
    %58 = arith.mulf %52, %52 : vector<1x128xf32>
    %59 = arith.subf %57, %58 : vector<1x128xf32>
    %cst_16 = arith.constant 0.000000e+00 : f32
    %60 = vector.broadcast %cst_16 : f32 to vector<1x128xf32>
    %61 = arith.maximumf %59, %60 : vector<1x128xf32>
    %62 = vector.broadcast %52 : vector<1x128xf32> to vector<8x128xf32>
    %63 = arith.subf %48, %62 : vector<8x128xf32>
    %cst_17 = arith.constant 9.99999997E-7 : f32
    %64 = vector.broadcast %cst_17 : f32 to vector<1x128xf32>
    %65 = arith.addf %61, %64 : vector<1x128xf32>
    %66 = math.rsqrt %65 : vector<1x128xf32>
    %67 = vector.broadcast %66 : vector<1x128xf32> to vector<8x128xf32>
    %68 = arith.mulf %63, %67 : vector<8x128xf32>
    %c0_18 = arith.constant 0 : index
    %c0_19 = arith.constant 0 : index
    %69 = vector.load %arg3[%c0_18, %c0_19] : memref<8x1xf32, #tpu.memory_space<vmem>>, vector<8x1xf32>
    %70 = vector.broadcast %69 : vector<8x1xf32> to vector<8x128xf32>
    %71 = arith.mulf %68, %70 : vector<8x128xf32>
    %c0_20 = arith.constant 0 : index
    %c0_21 = arith.constant 0 : index
    %72 = vector.load %arg4[%c0_20, %c0_21] : memref<8x1xf32, #tpu.memory_space<vmem>>, vector<8x1xf32>
    %73 = vector.broadcast %72 : vector<8x1xf32> to vector<8x128xf32>
    %74 = arith.addf %71, %73 : vector<8x128xf32>
    %cst_22 = arith.constant 0.000000e+00 : f32
    %75 = vector.broadcast %cst_22 : f32 to vector<8x128xf32>
    %76 = arith.maximumf %74, %75 : vector<8x128xf32>
    %77 = vector.broadcast %46 : vector<1x128xf32> to vector<8x128xf32>
    %78 = arith.mulf %76, %77 : vector<8x128xf32>
    %c0_23 = arith.constant 0 : index
    %c0_24 = arith.constant 0 : index
    %79 = vector.load %arg6[%c0_23, %c0_24] : memref<8x128xf32, #tpu.memory_space<vmem>>, vector<8x128xf32>
    tpu.vector_store %arg6[%c0_23, %c0_24], %78 {strides = array<i32>} : memref<8x128xf32, #tpu.memory_space<vmem>>, vector<8x128xf32>,
    return
  }
  func.func @transform_0(%arg0: i32) -> (i32, i32) {
    %c0_i32 = arith.constant 0 : i32
    %c0_i32_0 = arith.constant 0 : i32
    return %c0_i32, %arg0 : i32, i32
  }
  func.func @transform_1(%arg0: i32) -> (i32, i32) {
    %c0_i32 = arith.constant 0 : i32
    %c0_i32_0 = arith.constant 0 : i32
    %c0_i32_1 = arith.constant 0 : i32
    return %c0_i32, %c0_i32_0 : i32, i32
  }
  func.func @transform_2(%arg0: i32) -> (i32, i32) {
    %c0_i32 = arith.constant 0 : i32
    %c0_i32_0 = arith.constant 0 : i32
    %c0_i32_1 = arith.constant 0 : i32
    return %c0_i32, %c0_i32_0 : i32, i32
  }
  func.func @transform_3(%arg0: i32) -> (i32, i32) {
    %c0_i32 = arith.constant 0 : i32
    %c0_i32_0 = arith.constant 0 : i32
    %c0_i32_1 = arith.constant 0 : i32
    return %c0_i32, %c0_i32_0 : i32, i32
  }
  func.func @transform_4(%arg0: i32) -> (i32, i32) {
    %c0_i32 = arith.constant 0 : i32
    %c0_i32_0 = arith.constant 0 : i32
    return %c0_i32, %arg0 : i32, i32
  }
  func.func @transform_5(%arg0: i32) -> (i32, i32) {
    %c0_i32 = arith.constant 0 : i32
    %c0_i32_0 = arith.constant 0 : i32
    return %c0_i32, %arg0 : i32, i32
  }
}

</mosaic_0001>

<llo_original>
// kernel: conv_module_forward.1
$region0: #{conv_module_forward.1}
  #allocation0 [shape = 'u32[]', space=smem, size = 0x4, offset = 0x4, fixed_abs, tag = 'smem constant byte address 0x4 - core index']
  #allocation1 [shape = 'u32[144,128]{1,0:T(1,128)}', space=vmem, size = 0x12000, scoped, tag = 'internal scratch']
  %s0 = inlined_call_operand.vmem [shape: f32[4,512], index: 0, kind: input, shape index: {}]
  %s1 = inlined_call_operand.vmem [shape: f32[24,4], index: 1, kind: input, shape index: {}]
  %s2 = inlined_call_operand.vmem [shape: f32[8,1], index: 2, kind: input, shape index: {}]
  %s3 = inlined_call_operand.vmem [shape: f32[8,1], index: 3, kind: input, shape index: {}]
  %s4 = inlined_call_operand.vmem [shape: bf16[1,512], index: 4, kind: input, shape index: {}]
  %s5 = inlined_call_operand.vmem [shape: f32[8,512], index: 5, kind: output, shape index: {}]
  %s6 = sld [smem:[#allocation0]]
  $region53: #{conv_module_forward.1} parent=0
    _
  %s8 = ssub.s32 1, %s6
  %s9 = scalar_select 0, %s8, %s6
  loop: start=0, step=1, limit=6
  $region2: #{conv_module_forward.1} parent=0 // loop_pre_header
    _
  $region3: #{conv_module_forward.1} parent=0 // loop_header
    %s11 = sphi 0, %s15
    %p12 = scmp.ge.s32.totalorder %s11, 6
    %s21 = sphi 0, %s23
    %s24 = sphi 0, %s21
    %s25 = sphi 0, %s24
    %s41 = sphi 0, %s25
    %s45 = sphi 0, %s45
    %s47 = sphi 0, %s45
    %s48 = sphi 0, %s47
    %s62 = sphi 0, %s48
    %s66 = sphi 0, %s66
    %s68 = sphi 0, %s66
    %s69 = sphi 0, %s68
    %s83 = sphi 0, %s69
    %s87 = sphi 0, %s87
    %s89 = sphi 0, %s87
    %s90 = sphi 0, %s89
    %s104 = sphi 0, %s90
    %s110 = sphi 0, %s112
    %s113 = sphi 0, %s110
    %s114 = sphi 0, %s113
    %s130 = sphi 0, %s114
    %s136 = sphi 0, %s138
    %s139 = sphi 0, %s136
    %s140 = sphi 0, %s139
    %s156 = sphi 0, %s140
  $region4: #{conv_module_forward.1} parent=0 // loop_header_branch
    %14 = sbr.rel (%p12) target = $region8
  $region5: #{conv_module_forward.1} parent=0 // loop_body
    %s16 = ssub.s32 %s11, 1
    %s17 = ssub.s32 %s11, 2
    %s18 = sadd.s32 %s11, 1
    %s19 = ssub.s32 %s11, %s18
    %p20 = scmp.eq.s32.totalorder %s19, 0
    %s22 = sadd.s32 %s21, 1
    %s23 = scalar_select %p20, %s21, %s22
    %p26 = pneg %p20
    %p27 = scmp.eq.s32.totalorder %s11, 3
    %p28 = por %p26, %p27
    %p29 = scmp.ne.s32.totalorder %s21, %s24
    %p30 = scmp.eq.s32.totalorder %s11, 0
    %p31 = por %p29, %p30
    %p32 = scmp.ne.s32.totalorder %s21, %s24
    %p33 = scmp.eq.s32.totalorder %s16, 3
    %p34 = por %p32, %p33
    %p35 = scmp.ne.s32.totalorder %s24, %s25
    %p36 = scmp.eq.s32.totalorder %s16, 0
    %p37 = por %p35, %p36
    %p38 = scmp.ne.s32.totalorder %s24, %s25
    %p39 = scmp.eq.s32.totalorder %s17, 3
    %p40 = por %p38, %p39
    %p42 = scmp.ne.s32.totalorder %s25, %s41
    %p43 = scmp.eq.s32.totalorder %s17, 0
    %p44 = por %p42, %p43
    %s46 = sadd.s32 %s45, 1
    %p49 = scmp.eq.s32.totalorder %s11, 3
    %p50 = scmp.ne.s32.totalorder %s45, %s47
    %p51 = scmp.eq.s32.totalorder %s11, 0
    %p52 = por %p50, %p51
    %p53 = scmp.ne.s32.totalorder %s45, %s47
    %p54 = scmp.eq.s32.totalorder %s16, 3
    %p55 = por %p53, %p54
    %p56 = scmp.ne.s32.totalorder %s47, %s48
    %p57 = scmp.eq.s32.totalorder %s16, 0
    %p58 = por %p56, %p57
    %p59 = scmp.ne.s32.totalorder %s47, %s48
    %p60 = scmp.eq.s32.totalorder %s17, 3
    %p61 = por %p59, %p60
    %p63 = scmp.ne.s32.totalorder %s48, %s62
    %p64 = scmp.eq.s32.totalorder %s17, 0
    %p65 = por %p63, %p64
    %s67 = sadd.s32 %s66, 1
    %p70 = scmp.eq.s32.totalorder %s11, 3
    %p71 = scmp.ne.s32.totalorder %s66, %s68
    %p72 = scmp.eq.s32.totalorder %s11, 0
    %p73 = por %p71, %p72
    %p74 = scmp.ne.s32.totalorder %s66, %s68
    %p75 = scmp.eq.s32.totalorder %s16, 3
    %p76 = por %p74, %p75
    %p77 = scmp.ne.s32.totalorder %s68, %s69
    %p78 = scmp.eq.s32.totalorder %s16, 0
    %p79 = por %p77, %p78
    %p80 = scmp.ne.s32.totalorder %s68, %s69
    %p81 = scmp.eq.s32.totalorder %s17, 3
    %p82 = por %p80, %p81
    %p84 = scmp.ne.s32.totalorder %s69, %s83
    %p85 = scmp.eq.s32.totalorder %s17, 0
    %p86 = por %p84, %p85
    %s88 = sadd.s32 %s87, 1
    %p91 = scmp.eq.s32.totalorder %s11, 3
    %p92 = scmp.ne.s32.totalorder %s87, %s89
    %p93 = scmp.eq.s32.totalorder %s11, 0
    %p94 = por %p92, %p93
    %p95 = scmp.ne.s32.totalorder %s87, %s89
    %p96 = scmp.eq.s32.totalorder %s16, 3
    %p97 = por %p95, %p96
    %p98 = scmp.ne.s32.totalorder %s89, %s90
    %p99 = scmp.eq.s32.totalorder %s16, 0
    %p100 = por %p98, %p99
    %p101 = scmp.ne.s32.totalorder %s89, %s90
    %p102 = scmp.eq.s32.totalorder %s17, 3
    %p103 = por %p101, %p102
    %p105 = scmp.ne.s32.totalorder %s90, %s104
    %p106 = scmp.eq.s32.totalorder %s17, 0
    %p107 = por %p105, %p106
    %s108 = ssub.s32 %s11, %s18
    %p109 = scmp.eq.s32.totalorder %s108, 0
    %s111 = sadd.s32 %s110, 1
    %s112 = scalar_select %p109, %s110, %s111
    %p115 = pneg %p109
    %p116 = scmp.eq.s32.totalorder %s11, 3
    %p117 = por %p115, %p116
    %p118 = scmp.ne.s32.totalorder %s110, %s113
    %p119 = scmp.eq.s32.totalorder %s11, 0
    %p120 = por %p118, %p119
    %p121 = scmp.ne.s32.totalorder %s110, %s113
    %p122 = scmp.eq.s32.totalorder %s16, 3
    %p123 = por %p121, %p122
    %p124 = scmp.ne.s32.totalorder %s113, %s114
    %p125 = scmp.eq.s32.totalorder %s16, 0
    %p126 = por %p124, %p125
    %p127 = scmp.ne.s32.totalorder %s113, %s114
    %p128 = scmp.eq.s32.totalorder %s17, 3
    %p129 = por %p127, %p128
    %p131 = scmp.ne.s32.totalorder %s114, %s130
    %p132 = scmp.eq.s32.totalorder %s17, 0
    %p133 = por %p131, %p132
    %s134 = ssub.s32 %s11, %s18
    %p135 = scmp.eq.s32.totalorder %s134, 0
    %s137 = sadd.s32 %s136, 1
    %s138 = scalar_select %p135, %s136, %s137
    %p141 = pneg %p135
    %p142 = scmp.eq.s32.totalorder %s11, 3
    %p143 = por %p141, %p142
    %p144 = scmp.ne.s32.totalorder %s136, %s139
    %p145 = scmp.eq.s32.totalorder %s11, 0
    %p146 = por %p144, %p145
    %p147 = scmp.ne.s32.totalorder %s136, %s139
    %p148 = scmp.eq.s32.totalorder %s16, 3
    %p149 = por %p147, %p148
    %p150 = scmp.ne.s32.totalorder %s139, %s140
    %p151 = scmp.eq.s32.totalorder %s16, 0
    %p152 = por %p150, %p151
    %p153 = scmp.ne.s32.totalorder %s139, %s140
    %p154 = scmp.eq.s32.totalorder %s17, 3
    %p155 = por %p153, %p154
    %p157 = scmp.ne.s32.totalorder %s140, %s156
    %p158 = scmp.eq.s32.totalorder %s17, 0
    %p159 = por %p157, %p158
    %p160 = scmp.le.s32.totalorder 1, %s11
    %p161 = scmp.lt.s32.totalorder %s11, 5
    %p162 = pnand %p160, %p161
    %p163 = pneg %p162
    // Predicated region
    $region9: #{conv_module_forward.1} parent=5 // pred_check
      _
    $region10: #{conv_module_forward.1} parent=5 // pred_check_branch
      %165 = sbr.rel (%p162) target = $region12
    $region11: #{conv_module_forward.1} parent=5 // pred_region
      %s166 = ssub.s32 %s11, 1
      // Predicated region
      $region13: #{conv_module_forward.1} parent=11 // pred_check
        %p167 = pneg %p58
      $region14: #{conv_module_forward.1} parent=11 // pred_check_branch
        %169 = sbr.rel (%p167) target = $region16
      $region15: #{conv_module_forward.1} parent=11 // pred_region
        _
      $region16: #{conv_module_forward.1} parent=11 // pred_fallthru
        _
      // Predicated region
      $region17: #{conv_module_forward.1} parent=11 // pred_check
        %p170 = pneg %p79
      $region18: #{conv_module_forward.1} parent=11 // pred_check_branch
        %172 = sbr.rel (%p170) target = $region20
      $region19: #{conv_module_forward.1} parent=11 // pred_region
        _
      $region20: #{conv_module_forward.1} parent=11 // pred_fallthru
        _
      // Predicated region
      $region21: #{conv_module_forward.1} parent=11 // pred_check
        %p173 = pneg %p100
      $region22: #{conv_module_forward.1} parent=11 // pred_check_branch
        %175 = sbr.rel (%p173) target = $region24
      $region23: #{conv_module_forward.1} parent=11 // pred_region
        _
      $region24: #{conv_module_forward.1} parent=11 // pred_fallthru
        _
    $region12: #{conv_module_forward.1} parent=5 // pred_fallthru
      _
    %p176 = scmp.lt.s32.totalorder %s11, 4
    // Predicated region
    $region25: #{conv_module_forward.1} parent=5 // pred_check
      %p177 = pneg %p176
    $region26: #{conv_module_forward.1} parent=5 // pred_check_branch
      %179 = sbr.rel (%p177) target = $region28
    $region27: #{conv_module_forward.1} parent=5 // pred_region
      // Predicated region
      $region29: #{conv_module_forward.1} parent=27 // pred_check
        %p180 = pneg %p31
      $region30: #{conv_module_forward.1} parent=27 // pred_check_branch
        %182 = sbr.rel (%p180) target = $region32
      $region31: #{conv_module_forward.1} parent=27 // pred_region
        %p183 = scmp.lt.s32.totalorder %s11, 3
        %s184 = scalar_select %p183, %s11, 3
        %s185 = smul.addr %s184, 4
        %s186 = scalar_lea.vmem %s0, %s185
      $region32: #{conv_module_forward.1} parent=27 // pred_fallthru
        _
      // Predicated region
      $region33: #{conv_module_forward.1} parent=27 // pred_check
        %p187 = pneg %p120
      $region34: #{conv_module_forward.1} parent=27 // pred_check_branch
        %189 = sbr.rel (%p187) target = $region36
      $region35: #{conv_module_forward.1} parent=27 // pred_region
        %p190 = scmp.lt.s32.totalorder %s11, 3
        %s191 = scalar_select %p190, %s11, 3
        %s192 = scalar_lea.vmem %s4, %s191
      $region36: #{conv_module_forward.1} parent=27 // pred_fallthru
        _
    $region28: #{conv_module_forward.1} parent=5 // pred_fallthru
      _
    %p193 = scmp.le.s32.totalorder 1, %s11
    %p194 = scmp.lt.s32.totalorder %s11, 5
    %p195 = pnand %p193, %p194
    %p196 = pneg %p195
    // Predicated region
    $region37: #{conv_module_forward.1} parent=5 // pred_check
      _
    $region38: #{conv_module_forward.1} parent=5 // pred_check_branch
      %198 = sbr.rel (%p195) target = $region40
    $region39: #{conv_module_forward.1} parent=5 // pred_region
      %s199 = ssub.s32 %s11, 1
      %p200 = scmp.lt.s32.totalorder %s16, 3
      %s201 = scalar_select %p200, %s16, 3
      %s202 = smul.addr %s201, 4
      %s203 = scalar_lea.vmem %s0, %s202
      %p204 = pneg %p37
      %p205 = pneg %p34
      %p206 = pneg %p58
      %p207 = pneg %p55
      %p208 = pneg %p79
      %p209 = pneg %p76
      %p210 = pneg %p100
      %p211 = pneg %p97
      %p212 = scmp.lt.s32.totalorder %s16, 3
      %s213 = scalar_select %p212, %s16, 3
      %s214 = scalar_lea.vmem %s4, %s213
      %p215 = pneg %p126
      %p216 = pneg %p123
      %p217 = pneg %p152
      %p218 = pneg %p149
      %p219 = scmp.lt.s32.totalorder %s16, 3
      %s220 = scalar_select %p219, %s16, 3
      %s221 = smul.addr %s220, 8
      %s222 = scalar_lea.vmem %s5, %s221
      %p223 = scmp.lt.s32.totalorder %s16, 3
      %s224 = scalar_select %p223, %s16, 3
      %s225 = smul.addr %s224, 4
      %s226 = scalar_lea.vmem %s0, %s225
      %p227 = scmp.lt.s32.totalorder %s16, 3
      %s228 = scalar_select %p227, %s16, 3
      %s229 = scalar_lea.vmem %s4, %s228
      %p230 = scmp.lt.s32.totalorder %s16, 3
      %s231 = scalar_select %p230, %s16, 3
      %s232 = smul.addr %s231, 8
      %s233 = scalar_lea.vmem %s5, %s232
      %v234 = vld [vmem:[%s226] sm:$0xf]
      %v235 = vld [vmem:[%s1] sm:$0xff]
      %v236 = vld [vmem:[%s1 + $0x8] sm:$0xff]
      %v237 = vld [vmem:[%s1 + $0x10] sm:$0xff]
      %vm238 = vcmask 31744
      %v240 = vsel %vm238, %v235, 0
      %v243 = vsel %vm238, %v236, 0
      %v246 = vsel %vm238, %v237, 0
      %vm248 = vcmask 1043456
      %v250 = vsel %vm248, %v234, 0
      %252 = vmatprep.subr.mxu0 0.0
      %v253 = vand.u32 %v250, 4294901760
      %254 = vmatpush1.msra.mxu0 %v253
      %255 = vmatprep.subr.mxu0 0.0
      %256 = vmatpush1.msra.mxu0 0.0
      %257 = vmatprep.subr.mxu0 0.0
      %258 = vmatpush1.msra.mxu0 0.0
      %259 = vmatprep.subr.mxu0 0.0
      %260 = vmatpush1.msra.mxu0 0.0
      %261 = vmatprep.subr.mxu0 0.0
      %262 = vmatpush1.msra.mxu0 0.0
      %263 = vmatprep.subr.mxu0 0.0
      %264 = vmatpush1.msra.mxu0 0.0
      %265 = vmatprep.subr.mxu0 0.0
      %266 = vmatpush1.msra.mxu0 0.0
      %267 = vmatprep.subr.mxu0 0.0
      %268 = vmatpush1.msra.mxu0 0.0
      %269 = vmatprep.subr.mxu0 0.0
      %270 = vmatpush1.msra.mxu0 0.0
      %271 = vmatprep.subr.mxu0 0.0
      %272 = vmatpush1.msra.mxu0 0.0
      %273 = vmatprep.subr.mxu0 0.0
      %274 = vmatpush1.msra.mxu0 0.0
      %275 = vmatprep.subr.mxu0 0.0
      %276 = vmatpush1.msra.mxu0 0.0
      %277 = vmatprep.subr.mxu0 0.0
      %278 = vmatpush1.msra.mxu0 0.0
      %279 = vmatprep.subr.mxu0 0.0
      %280 = vmatpush1.msra.mxu0 0.0
      %281 = vmatprep.subr.mxu0 0.0
      %282 = vmatpush1.msra.mxu0 0.0
      %283 = vmatprep.subr.mxu0 0.0
      %284 = vmatpush1.msra.mxu0 0.0
      %285 = vmatprep.subr.mxu0 0.0
      %286 = vmatpush1.msra.mxu0 0.0
      %287 = vmatprep.subr.mxu0 0.0
      %288 = vmatpush1.msra.mxu0 0.0
      %289 = vmatprep.subr.mxu0 0.0
      %290 = vmatpush1.msra.mxu0 0.0
      %291 = vmatprep.subr.mxu0 0.0
      %292 = vmatpush1.msra.mxu0 0.0
      %293 = vmatprep.subr.mxu0 0.0
      %294 = vmatpush1.msra.mxu0 0.0
      %295 = vmatprep.subr.mxu0 0.0
      %296 = vmatpush1.msra.mxu0 0.0
      %297 = vmatprep.subr.mxu0 0.0
      %298 = vmatpush1.msra.mxu0 0.0
      %299 = vmatprep.subr.mxu0 0.0
      %300 = vmatpush1.msra.mxu0 0.0
      %301 = vmatprep.subr.mxu0 0.0
      %302 = vmatpush1.msra.mxu0 0.0
      %303 = vmatprep.subr.mxu0 0.0
      %304 = vmatpush1.msra.mxu0 0.0
      %305 = vmatprep.subr.mxu0 0.0
      %306 = vmatpush1.msra.mxu0 0.0
      %307 = vmatprep.subr.mxu0 0.0
      %308 = vmatpush1.msra.mxu0 0.0
      %309 = vmatprep.subr.mxu0 0.0
      %310 = vmatpush1.msra.mxu0 0.0
      %311 = vmatprep.subr.mxu0 0.0
      %312 = vmatpush1.msra.mxu0 0.0
      %313 = vmatprep.subr.mxu0 0.0
      %314 = vmatpush1.msra.mxu0 0.0
      %315 = vmatprep.subr.mxu0 0.0
      %316 = vmatpush1.msra.mxu0 0.0
      %317 = vmatprep.mubr.f32.mxu0 0.0
      %v318 = vand.u32 %v240, 4294901760
      %v319 = vsub.f32 %v240, %v318
      %v320 = vand.u32 %v319, 4294901760
      %v321 = vsub.f32 %v319, %v320
      %v322 = vand.u32 %v321, 4294901760
      %323 = vmatmul.mubr.f32.gmra.mrb[0].mxu0 %v322
      %v324 = vpop.f32.mrb[0].mxu0
      %v325 = vadd.f32 0.0, %v324
      %v326 = vpop.f32.mrb[0].mxu0
      %327 = vmatprep.mubr.f32.mxu0 0.0
      %v328 = vand.u32 %v243, 4294901760
      %v329 = vsub.f32 %v243, %v328
      %v330 = vand.u32 %v329, 4294901760
      %v331 = vsub.f32 %v329, %v330
      %v332 = vand.u32 %v331, 4294901760
      %333 = vmatmul.mubr.f32.gmra.mrb[0].mxu0 %v332
      %v334 = vpop.f32.mrb[0].mxu0
      %v335 = vadd.f32 0.0, %v334
      %v336 = vpop.f32.mrb[0].mxu0
      %337 = vmatprep.mubr.f32.mxu0 0.0
      %v338 = vand.u32 %v246, 4294901760
      %v339 = vsub.f32 %v246, %v338
      %v340 = vand.u32 %v339, 4294901760
      %v341 = vsub.f32 %v339, %v340
      %v342 = vand.u32 %v341, 4294901760
      %343 = vmatmul.mubr.f32.gmra.mrb[0].mxu0 %v342
      %v344 = vpop.f32.mrb[0].mxu0
      %v345 = vadd.f32 0.0, %v344
      %v346 = vpop.f32.mrb[0].mxu0
      %347 = vdwg.mxu0
      %348 = vmatprep.subr.mxu0 0.0
      %v349 = vand.u32 %v250, 4294901760
      %v350 = vsub.f32 %v250, %v349
      %v351 = vand.u32 %v350, 4294901760
      %v352 = vsub.f32 %v350, %v351
      %v353 = vand.u32 %v352, 4294901760
      %354 = vmatpush1.msra.mxu0 %v353
      %355 = vmatprep.subr.mxu0 0.0
      %356 = vmatpush1.msra.mxu0 0.0
      %357 = vmatprep.subr.mxu0 0.0
      %358 = vmatpush1.msra.mxu0 0.0
      %359 = vmatprep.subr.mxu0 0.0
      %360 = vmatpush1.msra.mxu0 0.0
      %361 = vmatprep.subr.mxu0 0.0
      %362 = vmatpush1.msra.mxu0 0.0
      %363 = vmatprep.subr.mxu0 0.0
      %364 = vmatpush1.msra.mxu0 0.0
      %365 = vmatprep.subr.mxu0 0.0
      %366 = vmatpush1.msra.mxu0 0.0
      %367 = vmatprep.subr.mxu0 0.0
      %368 = vmatpush1.msra.mxu0 0.0
      %369 = vmatprep.subr.mxu0 0.0
      %370 = vmatpush1.msra.mxu0 0.0
      %371 = vmatprep.subr.mxu0 0.0
      %372 = vmatpush1.msra.mxu0 0.0
      %373 = vmatprep.subr.mxu0 0.0
      %374 = vmatpush1.msra.mxu0 0.0
      %375 = vmatprep.subr.mxu0 0.0
      %376 = vmatpush1.msra.mxu0 0.0
      %377 = vmatprep.subr.mxu0 0.0
      %378 = vmatpush1.msra.mxu0 0.0
      %379 = vmatprep.subr.mxu0 0.0
      %380 = vmatpush1.msra.mxu0 0.0
      %381 = vmatprep.subr.mxu0 0.0
      %382 = vmatpush1.msra.mxu0 0.0
      %383 = vmatprep.subr.mxu0 0.0
      %384 = vmatpush1.msra.mxu0 0.0
      %385 = vmatprep.subr.mxu0 0.0
      %386 = vmatpush1.msra.mxu0 0.0
      %387 = vmatprep.subr.mxu0 0.0
      %388 = vmatpush1.msra.mxu0 0.0
      %389 = vmatprep.subr.mxu0 0.0
      %390 = vmatpush1.msra.mxu0 0.0
      %391 = vmatprep.subr.mxu0 0.0
      %392 = vmatpush1.msra.mxu0 0.0
      %393 = vmatprep.subr.mxu0 0.0
      %394 = vmatpush1.msra.mxu0 0.0
      %395 = vmatprep.subr.mxu0 0.0
      %396 = vmatpush1.msra.mxu0 0.0
      %397 = vmatprep.subr.mxu0 0.0
      %398 = vmatpush1.msra.mxu0 0.0
      %399 = vmatprep.subr.mxu0 0.0
      %400 = vmatpush1.msra.mxu0 0.0
      %401 = vmatprep.subr.mxu0 0.0
      %402 = vmatpush1.msra.mxu0 0.0
      %403 = vmatprep.subr.mxu0 0.0
      %404 = vmatpush1.msra.mxu0 0.0
      %405 = vmatprep.subr.mxu0 0.0
      %406 = vmatpush1.msra.mxu0 0.0
      %407 = vmatprep.subr.mxu0 0.0
      %408 = vmatpush1.msra.mxu0 0.0
      %409 = vmatprep.subr.mxu0 0.0
      %410 = vmatpush1.msra.mxu0 0.0
      %411 = vmatprep.subr.mxu0 0.0
      %412 = vmatpush1.msra.mxu0 0.0
      %413 = vmatprep.subr.mxu0 0.0
      %414 = vmatpush1.msra.mxu0 0.0
      %415 = vmatprep.subr.mxu0 0.0
      %416 = vmatpush1.msra.mxu0 0.0
      %417 = vmatprep.mubr.f32.mxu0 0.0
      %v418 = vand.u32 %v240, 4294901760
      %419 = vmatmul.mubr.f32.gmra.mrb[0].mxu0 %v418
      %v420 = vpop.f32.mrb[0].mxu0
      %v421 = vadd.f32 %v325, %v420
      %v422 = vpop.f32.mrb[0].mxu0
      %423 = vmatprep.mubr.f32.mxu0 0.0
      %v424 = vand.u32 %v243, 4294901760
      %425 = vmatmul.mubr.f32.gmra.mrb[0].mxu0 %v424
      %v426 = vpop.f32.mrb[0].mxu0
      %v427 = vadd.f32 %v335, %v426
      %v428 = vpop.f32.mrb[0].mxu0
      %429 = vmatprep.mubr.f32.mxu0 0.0
      %v430 = vand.u32 %v246, 4294901760
      %431 = vmatmul.mubr.f32.gmra.mrb[0].mxu0 %v430
      %v432 = vpop.f32.mrb[0].mxu0
      %v433 = vadd.f32 %v345, %v432
      %v434 = vpop.f32.mrb[0].mxu0
      %435 = vdwg.mxu0
      %436 = vmatprep.subr.mxu0 0.0
      %v437 = vand.u32 %v250, 4294901760
      %v438 = vsub.f32 %v250, %v437
      %439 = vmatpush1.msra.mxu0 %v438
      %440 = vmatprep.subr.mxu0 0.0
      %441 = vmatpush1.msra.mxu0 0.0
      %442 = vmatprep.subr.mxu0 0.0
      %443 = vmatpush1.msra.mxu0 0.0
      %444 = vmatprep.subr.mxu0 0.0
      %445 = vmatpush1.msra.mxu0 0.0
      %446 = vmatprep.subr.mxu0 0.0
      %447 = vmatpush1.msra.mxu0 0.0
      %448 = vmatprep.subr.mxu0 0.0
      %449 = vmatpush1.msra.mxu0 0.0
      %450 = vmatprep.subr.mxu0 0.0
      %451 = vmatpush1.msra.mxu0 0.0
      %452 = vmatprep.subr.mxu0 0.0
      %453 = vmatpush1.msra.mxu0 0.0
      %454 = vmatprep.subr.mxu0 0.0
      %455 = vmatpush1.msra.mxu0 0.0
      %456 = vmatprep.subr.mxu0 0.0
      %457 = vmatpush1.msra.mxu0 0.0
      %458 = vmatprep.subr.mxu0 0.0
      %459 = vmatpush1.msra.mxu0 0.0
      %460 = vmatprep.subr.mxu0 0.0
      %461 = vmatpush1.msra.mxu0 0.0
      %462 = vmatprep.subr.mxu0 0.0
      %463 = vmatpush1.msra.mxu0 0.0
      %464 = vmatprep.subr.mxu0 0.0
      %465 = vmatpush1.msra.mxu0 0.0
      %466 = vmatprep.subr.mxu0 0.0
      %467 = vmatpush1.msra.mxu0 0.0
      %468 = vmatprep.subr.mxu0 0.0
      %469 = vmatpush1.msra.mxu0 0.0
      %470 = vmatprep.subr.mxu0 0.0
      %471 = vmatpush1.msra.mxu0 0.0
      %472 = vmatprep.subr.mxu0 0.0
      %473 = vmatpush1.msra.mxu0 0.0
      %474 = vmatprep.subr.mxu0 0.0
      %475 = vmatpush1.msra.mxu0 0.0
      %476 = vmatprep.subr.mxu0 0.0
      %477 = vmatpush1.msra.mxu0 0.0
      %478 = vmatprep.subr.mxu0 0.0
      %479 = vmatpush1.msra.mxu0 0.0
      %480 = vmatprep.subr.mxu0 0.0
      %481 = vmatpush1.msra.mxu0 0.0
      %482 = vmatprep.subr.mxu0 0.0
      %483 = vmatpush1.msra.mxu0 0.0
      %484 = vmatprep.subr.mxu0 0.0
      %485 = vmatpush1.msra.mxu0 0.0
      %486 = vmatprep.subr.mxu0 0.0
      %487 = vmatpush1.msra.mxu0 0.0
      %488 = vmatprep.subr.mxu0 0.0
      %489 = vmatpush1.msra.mxu0 0.0
      %490 = vmatprep.subr.mxu0 0.0
      %491 = vmatpush1.msra.mxu0 0.0
      %492 = vmatprep.subr.mxu0 0.0
      %493 = vmatpush1.msra.mxu0 0.0
      %494 = vmatprep.subr.mxu0 0.0
      %495 = vmatpush1.msra.mxu0 0.0
      %496 = vmatprep.subr.mxu0 0.0
      %497 = vmatpush1.msra.mxu0 0.0
      %498 = vmatprep.subr.mxu0 0.0
      %499 = vmatpush1.msra.mxu0 0.0
      %500 = vmatprep.subr.mxu0 0.0
      %501 = vmatpush1.msra.mxu0 0.0
      %502 = vmatprep.mubr.f32.mxu0 0.0
      %v503 = vand.u32 %v240, 4294901760
      %v504 = vsub.f32 %v240, %v503
      %505 = vmatmul.mubr.f32.gmra.mrb[0].mxu0 %v504
      %v506 = vpop.f32.mrb[0].mxu0
      %v507 = vadd.f32 %v421, %v506
      %v508 = vpop.f32.mrb[0].mxu0
      %509 = vmatprep.mubr.f32.mxu0 0.0
      %v510 = vand.u32 %v243, 4294901760
      %v511 = vsub.f32 %v243, %v510
      %512 = vmatmul.mubr.f32.gmra.mrb[0].mxu0 %v511
      %v513 = vpop.f32.mrb[0].mxu0
      %v514 = vadd.f32 %v427, %v513
      %v515 = vpop.f32.mrb[0].mxu0
      %516 = vmatprep.mubr.f32.mxu0 0.0
      %v517 = vand.u32 %v246, 4294901760
      %v518 = vsub.f32 %v246, %v517
      %519 = vmatmul.mubr.f32.gmra.mrb[0].mxu0 %v518
      %v520 = vpop.f32.mrb[0].mxu0
      %v521 = vadd.f32 %v433, %v520
      %v522 = vpop.f32.mrb[0].mxu0
      %523 = vdwg.mxu0
      %524 = vmatprep.subr.mxu0 0.0
      %v525 = vand.u32 %v250, 4294901760
      %526 = vmatpush1.msra.mxu0 %v525
      %527 = vmatprep.subr.mxu0 0.0
      %528 = vmatpush1.msra.mxu0 0.0
      %529 = vmatprep.subr.mxu0 0.0
      %530 = vmatpush1.msra.mxu0 0.0
      %531 = vmatprep.subr.mxu0 0.0
      %532 = vmatpush1.msra.mxu0 0.0
      %533 = vmatprep.subr.mxu0 0.0
      %534 = vmatpush1.msra.mxu0 0.0
      %535 = vmatprep.subr.mxu0 0.0
      %536 = vmatpush1.msra.mxu0 0.0
      %537 = vmatprep.subr.mxu0 0.0
      %538 = vmatpush1.msra.mxu0 0.0
      %539 = vmatprep.subr.mxu0 0.0
      %540 = vmatpush1.msra.mxu0 0.0
      %541 = vmatprep.subr.mxu0 0.0
      %542 = vmatpush1.msra.mxu0 0.0
      %543 = vmatprep.subr.mxu0 0.0
      %544 = vmatpush1.msra.mxu0 0.0
      %545 = vmatprep.subr.mxu0 0.0
      %546 = vmatpush1.msra.mxu0 0.0
      %547 = vmatprep.subr.mxu0 0.0
      %548 = vmatpush1.msra.mxu0 0.0
      %549 = vmatprep.subr.mxu0 0.0
      %550 = vmatpush1.msra.mxu0 0.0
      %551 = vmatprep.subr.mxu0 0.0
      %552 = vmatpush1.msra.mxu0 0.0
      %553 = vmatprep.subr.mxu0 0.0
      %554 = vmatpush1.msra.mxu0 0.0
      %555 = vmatprep.subr.mxu0 0.0
      %556 = vmatpush1.msra.mxu0 0.0
      %557 = vmatprep.subr.mxu0 0.0
      %558 = vmatpush1.msra.mxu0 0.0
      %559 = vmatprep.subr.mxu0 0.0
      %560 = vmatpush1.msra.mxu0 0.0
      %561 = vmatprep.subr.mxu0 0.0
      %562 = vmatpush1.msra.mxu0 0.0
      %563 = vmatprep.subr.mxu0 0.0
      %564 = vmatpush1.msra.mxu0 0.0
      %565 = vmatprep.subr.mxu0 0.0
      %566 = vmatpush1.msra.mxu0 0.0
      %567 = vmatprep.subr.mxu0 0.0
      %568 = vmatpush1.msra.mxu0 0.0
      %569 = vmatprep.subr.mxu0 0.0
      %570 = vmatpush1.msra.mxu0 0.0
      %571 = vmatprep.subr.mxu0 0.0
      %572 = vmatpush1.msra.mxu0 0.0
      %573 = vmatprep.subr.mxu0 0.0
      %574 = vmatpush1.msra.mxu0 0.0
      %575 = vmatprep.subr.mxu0 0.0
      %576 = vmatpush1.msra.mxu0 0.0
      %577 = vmatprep.subr.mxu0 0.0
      %578 = vmatpush1.msra.mxu0 0.0
      %579 = vmatprep.subr.mxu0 0.0
      %580 = vmatpush1.msra.mxu0 0.0
      %581 = vmatprep.subr.mxu0 0.0
      %582 = vmatpush1.msra.mxu0 0.0
      %583 = vmatprep.subr.mxu0 0.0
      %584 = vmatpush1.msra.mxu0 0.0
      %585 = vmatprep.subr.mxu0 0.0
      %586 = vmatpush1.msra.mxu0 0.0
      %587 = vmatprep.subr.mxu0 0.0
      %588 = vmatpush1.msra.mxu0 0.0
      %589 = vmatprep.mubr.f32.mxu0 0.0
      %v590 = vand.u32 %v240, 4294901760
      %v591 = vsub.f32 %v240, %v590
      %v592 = vand.u32 %v591, 4294901760
      %593 = vmatmul.mubr.f32.gmra.mrb[0].mxu0 %v592
      %v594 = vpop.f32.mrb[0].mxu0
      %v595 = vadd.f32 %v507, %v594
      %v596 = vpop.f32.mrb[0].mxu0
      %597 = vmatprep.mubr.f32.mxu0 0.0
      %v598 = vand.u32 %v243, 4294901760
      %v599 = vsub.f32 %v243, %v598
      %v600 = vand.u32 %v599, 4294901760
      %601 = vmatmul.mubr.f32.gmra.mrb[0].mxu0 %v600
      %v602 = vpop.f32.mrb[0].mxu0
      %v603 = vadd.f32 %v514, %v602
      %v604 = vpop.f32.mrb[0].mxu0
      %605 = vmatprep.mubr.f32.mxu0 0.0
      %v606 = vand.u32 %v246, 4294901760
      %v607 = vsub.f32 %v246, %v606
      %v608 = vand.u32 %v607, 4294901760
      %609 = vmatmul.mubr.f32.gmra.mrb[0].mxu0 %v608
      %v610 = vpop.f32.mrb[0].mxu0
      %v611 = vadd.f32 %v521, %v610
      %v612 = vpop.f32.mrb[0].mxu0
      %613 = vdwg.mxu0
      %614 = vmatprep.subr.mxu0 0.0
      %v615 = vand.u32 %v250, 4294901760
      %v616 = vsub.f32 %v250, %v615
      %v617 = vand.u32 %v616, 4294901760
      %618 = vmatpush1.msra.mxu0 %v617
      %619 = vmatprep.subr.mxu0 0.0
      %620 = vmatpush1.msra.mxu0 0.0
      %621 = vmatprep.subr.mxu0 0.0
      %622 = vmatpush1.msra.mxu0 0.0
      %623 = vmatprep.subr.mxu0 0.0
      %624 = vmatpush1.msra.mxu0 0.0
      %625 = vmatprep.subr.mxu0 0.0
      %626 = vmatpush1.msra.mxu0 0.0
      %627 = vmatprep.subr.mxu0 0.0
      %628 = vmatpush1.msra.mxu0 0.0
      %629 = vmatprep.subr.mxu0 0.0
      %630 = vmatpush1.msra.mxu0 0.0
      %631 = vmatprep.subr.mxu0 0.0
      %632 = vmatpush1.msra.mxu0 0.0
      %633 = vmatprep.subr.mxu0 0.0
      %634 = vmatpush1.msra.mxu0 0.0
      %635 = vmatprep.subr.mxu0 0.0
      %636 = vmatpush1.msra.mxu0 0.0
      %637 = vmatprep.subr.mxu0 0.0
      %638 = vmatpush1.msra.mxu0 0.0
      %639 = vmatprep.subr.mxu0 0.0
      %640 = vmatpush1.msra.mxu0 0.0
      %641 = vmatprep.subr.mxu0 0.0
      %642 = vmatpush1.msra.mxu0 0.0
      %643 = vmatprep.subr.mxu0 0.0
      %644 = vmatpush1.msra.mxu0 0.0
      %645 = vmatprep.subr.mxu0 0.0
      %646 = vmatpush1.msra.mxu0 0.0
      %647 = vmatprep.subr.mxu0 0.0
      %648 = vmatpush1.msra.mxu0 0.0
      %649 = vmatprep.subr.mxu0 0.0
      %650 = vmatpush1.msra.mxu0 0.0
      %651 = vmatprep.subr.mxu0 0.0
      %652 = vmatpush1.msra.mxu0 0.0
      %653 = vmatprep.subr.mxu0 0.0
      %654 = vmatpush1.msra.mxu0 0.0
      %655 = vmatprep.subr.mxu0 0.0
      %656 = vmatpush1.msra.mxu0 0.0
      %657 = vmatprep.subr.mxu0 0.0
      %658 = vmatpush1.msra.mxu0 0.0
      %659 = vmatprep.subr.mxu0 0.0
      %660 = vmatpush1.msra.mxu0 0.0
      %661 = vmatprep.subr.mxu0 0.0
      %662 = vmatpush1.msra.mxu0 0.0
      %663 = vmatprep.subr.mxu0 0.0
      %664 = vmatpush1.msra.mxu0 0.0
      %665 = vmatprep.subr.mxu0 0.0
      %666 = vmatpush1.msra.mxu0 0.0
      %667 = vmatprep.subr.mxu0 0.0
      %668 = vmatpush1.msra.mxu0 0.0
      %669 = vmatprep.subr.mxu0 0.0
      %670 = vmatpush1.msra.mxu0 0.0
      %671 = vmatprep.subr.mxu0 0.0
      %672 = vmatpush1.msra.mxu0 0.0
      %673 = vmatprep.subr.mxu0 0.0
      %674 = vmatpush1.msra.mxu0 0.0
      %675 = vmatprep.subr.mxu0 0.0
      %676 = vmatpush1.msra.mxu0 0.0
      %677 = vmatprep.subr.mxu0 0.0
      %678 = vmatpush1.msra.mxu0 0.0
      %679 = vmatprep.subr.mxu0 0.0
      %680 = vmatpush1.msra.mxu0 0.0
      %681 = vmatprep.mubr.f32.mxu0 0.0
      %v682 = vand.u32 %v240, 4294901760
      %683 = vmatmul.mubr.f32.gmra.mrb[0].mxu0 %v682
      %v684 = vpop.f32.mrb[0].mxu0
      %v685 = vadd.f32 %v595, %v684
      %v686 = vpop.f32.mrb[0].mxu0
      %687 = vmatprep.mubr.f32.mxu0 0.0
      %v688 = vand.u32 %v243, 4294901760
      %689 = vmatmul.mubr.f32.gmra.mrb[0].mxu0 %v688
      %v690 = vpop.f32.mrb[0].mxu0
      %v691 = vadd.f32 %v603, %v690
      %v692 = vpop.f32.mrb[0].mxu0
      %693 = vmatprep.mubr.f32.mxu0 0.0
      %v694 = vand.u32 %v246, 4294901760
      %695 = vmatmul.mubr.f32.gmra.mrb[0].mxu0 %v694
      %v696 = vpop.f32.mrb[0].mxu0
      %v697 = vadd.f32 %v611, %v696
      %v698 = vpop.f32.mrb[0].mxu0
      %699 = vdwg.mxu0
      %700 = vmatprep.subr.mxu0 0.0
      %v701 = vand.u32 %v250, 4294901760
      %702 = vmatpush1.msra.mxu0 %v701
      %703 = vmatprep.subr.mxu0 0.0
      %704 = vmatpush1.msra.mxu0 0.0
      %705 = vmatprep.subr.mxu0 0.0
      %706 = vmatpush1.msra.mxu0 0.0
      %707 = vmatprep.subr.mxu0 0.0
      %708 = vmatpush1.msra.mxu0 0.0
      %709 = vmatprep.subr.mxu0 0.0
      %710 = vmatpush1.msra.mxu0 0.0
      %711 = vmatprep.subr.mxu0 0.0
      %712 = vmatpush1.msra.mxu0 0.0
      %713 = vmatprep.subr.mxu0 0.0
      %714 = vmatpush1.msra.mxu0 0.0
      %715 = vmatprep.subr.mxu0 0.0
      %716 = vmatpush1.msra.mxu0 0.0
      %717 = vmatprep.subr.mxu0 0.0
      %718 = vmatpush1.msra.mxu0 0.0
      %719 = vmatprep.subr.mxu0 0.0
      %720 = vmatpush1.msra.mxu0 0.0
      %721 = vmatprep.subr.mxu0 0.0
      %722 = vmatpush1.msra.mxu0 0.0
      %723 = vmatprep.subr.mxu0 0.0
      %724 = vmatpush1.msra.mxu0 0.0
      %725 = vmatprep.subr.mxu0 0.0
      %726 = vmatpush1.msra.mxu0 0.0
      %727 = vmatprep.subr.mxu0 0.0
      %728 = vmatpush1.msra.mxu0 0.0
      %729 = vmatprep.subr.mxu0 0.0
      %730 = vmatpush1.msra.mxu0 0.0
      %731 = vmatprep.subr.mxu0 0.0
      %732 = vmatpush1.msra.mxu0 0.0
      %733 = vmatprep.subr.mxu0 0.0
      %734 = vmatpush1.msra.mxu0 0.0
      %735 = vmatprep.subr.mxu0 0.0
      %736 = vmatpush1.msra.mxu0 0.0
      %737 = vmatprep.subr.mxu0 0.0
      %738 = vmatpush1.msra.mxu0 0.0
      %739 = vmatprep.subr.mxu0 0.0
      %740 = vmatpush1.msra.mxu0 0.0
      %741 = vmatprep.subr.mxu0 0.0
      %742 = vmatpush1.msra.mxu0 0.0
      %743 = vmatprep.subr.mxu0 0.0
      %744 = vmatpush1.msra.mxu0 0.0
      %745 = vmatprep.subr.mxu0 0.0
      %746 = vmatpush1.msra.mxu0 0.0
      %747 = vmatprep.subr.mxu0 0.0
      %748 = vmatpush1.msra.mxu0 0.0
      %749 = vmatprep.subr.mxu0 0.0
      %750 = vmatpush1.msra.mxu0 0.0
      %751 = vmatprep.subr.mxu0 0.0
      %752 = vmatpush1.msra.mxu0 0.0
      %753 = vmatprep.subr.mxu0 0.0
      %754 = vmatpush1.msra.mxu0 0.0
      %755 = vmatprep.subr.mxu0 0.0
      %756 = vmatpush1.msra.mxu0 0.0
      %757 = vmatprep.subr.mxu0 0.0
      %758 = vmatpush1.msra.mxu0 0.0
      %759 = vmatprep.subr.mxu0 0.0
      %760 = vmatpush1.msra.mxu0 0.0
      %761 = vmatprep.subr.mxu0 0.0
      %762 = vmatpush1.msra.mxu0 0.0
      %763 = vmatprep.subr.mxu0 0.0
      %764 = vmatpush1.msra.mxu0 0.0
      %765 = vmatprep.mubr.f32.mxu0 0.0
      %v766 = vand.u32 %v240, 4294901760
      %767 = vmatmul.mubr.f32.gmra.mrb[0].mxu0 %v766
      %v768 = vpop.f32.mrb[0].mxu0
      %v769 = vadd.f32 %v685, %v768
      %v770 = vpop.f32.mrb[0].mxu0
      %771 = vmatprep.mubr.f32.mxu0 0.0
      %v772 = vand.u32 %v243, 4294901760
      %773 = vmatmul.mubr.f32.gmra.mrb[0].mxu0 %v772
      %v774 = vpop.f32.mrb[0].mxu0
      %v775 = vadd.f32 %v691, %v774
      %v776 = vpop.f32.mrb[0].mxu0
      %777 = vmatprep.mubr.f32.mxu0 0.0
      %v778 = vand.u32 %v246, 4294901760
      %779 = vmatmul.mubr.f32.gmra.mrb[0].mxu0 %v778
      %v780 = vpop.f32.mrb[0].mxu0
      %v781 = vadd.f32 %v697, %v780
      %v782 = vpop.f32.mrb[0].mxu0
      %783 = vdwg.mxu0
      %v784 = vlaneseq
      %v785 = vand.u32 %v784, 127
      %vm786 = vcmp.lt.s32.totalorder %v785, 0
      %v787 = vsub.s32 0, %v785
      %v788 = vsel %vm786, %v787, %v785
      %v789 = vshrl.u32 %v788, 5
      %v790 = vand.u32 %v788, 31
      %v791 = vsub.s32 0, %v790
      %v792 = vsel %vm786, %v791, %v790
      %vm793 = vcmp.ne.s32.totalorder %v792, 0
      %vm794 = vcmp.lt.s32.totalorder %v792, 0
      %vm795 = vmand %vm794, %vm793
      %v796 = vadd.s32 %v792, 32
      %v797 = vsel %vm795, %v796, %v792
      %798 = vrot.lane.b32.xlu0 %v769, 1
      %v799 = vpop.permute.xlu0 %798
      %vm800 = vcmp.ge.s32.totalorder %v797, 1
      %vm801 = vcmp.lt.s32.totalorder %v797, 33
      %vm802 = vmand %vm800, %vm801
      %v803 = vsel %vm802, 1, 0
      %vm804 = vcmp.eq.s32.totalorder %v803, 1
      %v805 = vsel %vm804, %v799, 0.0
      %v806 = vadd.f32 %v805, %v775
      %807 = vrot.lane.b32.xlu0 %v781, 127
      %v808 = vpop.permute.xlu0 %807
      %vm809 = vcmp.ge.s32.totalorder %v797, 4294967295
      %vm810 = vcmp.lt.s32.totalorder %v797, 31
      %vm811 = vmand %vm809, %vm810
      %v812 = vsel %vm811, 1, 0
      %vm813 = vcmp.eq.s32.totalorder %v812, 1
      %v814 = vsel %vm813, %v808, 0.0
      %v815 = vadd.f32 %v806, %v814
      %v816 = vld [vmem:[%s229] sm:$0x1]
      %v817 = vunpack.c.l.bf16 %v816
      %v818 = vlaneseq
      %v819 = vshrl.u32 %v818, 7
      %v820 = vsub.s32 0, %v819
      %v821 = vrot.slane %v817, %v820
      %v822 = vmul.f32 %v815, %v821
      %v823 = vrot.slane %v822, 4
      %v824 = vadd.f32 %v822, %v823
      %v825 = vrot.slane %v824, 2
      %v826 = vadd.f32 %v824, %v825
      %v827 = vrot.slane %v826, 1
      %v828 = vadd.f32 %v826, %v827
      %v829 = vmul.f32 %v828, 0.125
      %v830 = vmul.f32 %v822, %v822
      %v831 = vrot.slane %v830, 4
      %v832 = vadd.f32 %v830, %v831
      %v833 = vrot.slane %v832, 2
      %v834 = vadd.f32 %v832, %v833
      %v835 = vrot.slane %v834, 1
      %v836 = vadd.f32 %v834, %v835
      %v837 = vmul.f32 %v836, 0.125
      %v838 = vmul.f32 %v829, %v829
      %v839 = vsub.f32 %v837, %v838
      %v840 = vmax.f32 %v839, 0.0
      %v841 = vsub.f32 %v822, %v829
      %v842 = vadd.f32 %v840, 1e-06
      %v843 = vrsqrt.pop %v842
      %v844 = vmul.f32 %v841, %v843
      %v845 = vld [vmem:[%s2] sm:$0xff]
      %847 = vset.pattern.permute.xlu0 0
      %848 = vperm.xlu0 %847, %v845
      %v849 = vpop.permute.xlu0 %848
      %v851 = vmul.f32 %v844, %v849
      %v852 = vld [vmem:[%s3] sm:$0xff]
      %854 = vset.pattern.permute.xlu0 0
      %855 = vperm.xlu0 %854, %v852
      %v856 = vpop.permute.xlu0 %855
      %v858 = vadd.f32 %v851, %v856
      %v859 = vmax.f32 %v858, 0.0
      %v860 = vmul.f32 %v859, %v821
      %861 = vst [vmem:[%s233] sm:$0xff] %v860
      %p862 = scmp.lt.s32.totalorder %s16, 3
      %s863 = scalar_select %p862, %s16, 3
      %s864 = smul.addr %s863, 8
      %s865 = scalar_lea.vmem %s5, %s864
      // Predicated region
      $region41: #{conv_module_forward.1} parent=39 // pred_check
        %p866 = pneg %p149
      $region42: #{conv_module_forward.1} parent=39 // pred_check_branch
        %868 = sbr.rel (%p866) target = $region44
      $region43: #{conv_module_forward.1} parent=39 // pred_region
        _
      $region44: #{conv_module_forward.1} parent=39 // pred_fallthru
        _
    $region40: #{conv_module_forward.1} parent=5 // pred_fallthru
      _
    %p869 = scmp.le.s32.totalorder 2, %s11
    // Predicated region
    $region45: #{conv_module_forward.1} parent=5 // pred_check
      %p870 = pneg %p869
    $region46: #{conv_module_forward.1} parent=5 // pred_check_branch
      %872 = sbr.rel (%p870) target = $region48
    $region47: #{conv_module_forward.1} parent=5 // pred_region
      %s873 = ssub.s32 %s11, 2
      // Predicated region
      $region49: #{conv_module_forward.1} parent=47 // pred_check
        %p874 = pneg %p155
      $region50: #{conv_module_forward.1} parent=47 // pred_check_branch
        %876 = sbr.rel (%p874) target = $region52
      $region51: #{conv_module_forward.1} parent=47 // pred_region
        %p877 = scmp.lt.s32.totalorder %s17, 3
        %s878 = scalar_select %p877, %s17, 3
        %s879 = smul.addr %s878, 8
        %s880 = scalar_lea.vmem %s5, %s879
      $region52: #{conv_module_forward.1} parent=47 // pred_fallthru
        _
    $region48: #{conv_module_forward.1} parent=5 // pred_fallthru
      _
  $region6: #{conv_module_forward.1} parent=0 // loop_footer
    %s15 = sadd.s32 1, %s11
  $region7: #{conv_module_forward.1} parent=0 // loop_footer_branch
    %10 = sbr.rel target = $region3
  $region8: #{conv_module_forward.1} parent=0 // loop_exit
    _

</llo_original>
